<compile_context>
chip_gen: v6e
topology: v6e:2x2x1
jax: 0.10.0
libtpu: 0.0.40
codegen_flags: <defaults>
</compile_context>

<pallas_src>
import jax
import jax.numpy as jnp
from jax import lax
from jax.experimental import pallas as pl
from jax.experimental.pallas import tpu as pltpu


def _modulator_kernel(alpha_ref, x_ref, m_ref, o_ref):
    # Block shapes: x/m/o = (Bb, C, T); alpha_ref = (1,) f32 in SMEM.
    x = x_ref[...].astype(jnp.float32)
    m = m_ref[...].astype(jnp.float32)
    alpha = alpha_ref[0]

    # denorm = ||x||_2 over channels, clamped to >= 1e-12.
    # Clamp the sum of squares to 1e-24 (== 1e-12 ** 2) and use rsqrt (EUP).
    ssx = jnp.maximum(jnp.sum(x * x, axis=1, keepdims=True), 1e-24)
    inv_denorm = lax.rsqrt(ssx)          # 1 / denorm
    denorm = ssx * inv_denorm            # sqrt(ssx) == clamped L2 norm

    # alpha <= 0 : keep x as-is ;  alpha > 0 : x <- x * (alpha / denorm)
    x_scale = jnp.where(alpha > 0.0, alpha * inv_denorm,
                        jnp.ones_like(inv_denorm))
    s = x * x_scale + m

    # F.normalize(s, dim=1) == s / max(||s||_2, 1e-12); fold "* denorm" into
    # one per-(b, spatial) scale so each element gets a single multiply.
    sss = jnp.maximum(jnp.sum(s * s, axis=1, keepdims=True), 1e-24)
    scale = denorm * lax.rsqrt(sss)

    o_ref[...] = (s * scale).astype(o_ref.dtype)


def _choose_tiling(B, C, HW, budget_bytes):
    """Pick (Bb, T, grid) so 3 arrays x 2 buffers x Bb*C*T*4B fits the budget."""
    def ws(bb, t):
        return 6 * bb * C * t * 4  # bytes

    # Case 1: a full spatial row fits -> fold batch into the block.
    if ws(1, HW) <= budget_bytes:
        bb = 1
        for cand in range(B, 0, -1):
            if B % cand == 0 and ws(cand, HW) <= budget_bytes:
                bb = cand
                break
        # Keep >= 2 grid steps when B > 1 so v7x's two TensorCores both work.
        if bb == B and B > 1:
            for cand in range(B // 2, 0, -1):
                if B % cand == 0:
                    bb = cand
                    break
        return bb, HW, (B // bb, 1)

    # Case 2: tile the spatial axis in multiples of 128 lanes, as large as the
    # budget allows (bigger tiles -> fewer grid steps -> closer to roofline).
    if HW % 128 == 0:
        t = 128
        for cand in range(HW, 127, -128):
            if HW % cand == 0 and ws(1, cand) <= budget_bytes:
                t = cand
                break
        return 1, t, (B, HW // t)

    # Fallback: full spatial row (block dim == full array dim is always legal).
    return 1, HW, (B, 1)


def modulator_forward(x, modulation, *, alpha=-1.0, alpha_mode="fixed",
                      alpha_factor=0.0,
                      vmem_budget_bytes=24 << 20,     # working-set target
                      vmem_limit_bytes=48 << 20):     # safe on v5e/v6e/v7x
    """Pallas implementation of Modulator.forward.

    x, modulation: (B, C, H, W) float32 (NCHW, matching the PyTorch module).
    alpha_factor may be a traced JAX scalar when alpha_mode == 'learned'.
    """
    assert x.shape == modulation.shape
    B, C, H, W = x.shape
    HW = H * W

    if alpha_mode == "learned":
        alpha_val = jnp.exp(jnp.asarray(alpha_factor, jnp.float32))
    else:
        alpha_val = jnp.asarray(alpha, jnp.float32)
    alpha_arr = jnp.reshape(alpha_val, (1,)).astype(jnp.float32)

    # (B, C, H, W) -> (B, C, H*W) is layout-free (contiguous last dims).
    x3 = x.reshape(B, C, HW)
    m3 = modulation.reshape(B, C, HW)

    Bb, T, grid = _choose_tiling(B, C, HW, vmem_budget_bytes)

    out3 = pl.pallas_call(
        _modulator_kernel,
        out_shape=jax.ShapeDtypeStruct((B, C, HW), x.dtype),
        grid_spec=pltpu.PrefetchScalarGridSpec(
            num_scalar_prefetch=1,   # alpha scalar -> SMEM
            grid=grid,
            in_specs=[
                pl.BlockSpec((Bb, C, T), lambda b, t, alpha_p: (b, 0, t)),
                pl.BlockSpec((Bb, C, T), lambda b, t, alpha_p: (b, 0, t)),
            ],
            out_specs=pl.BlockSpec((Bb, C, T), lambda b, t, alpha_p: (b, 0, t)),
        ),
        compiler_params=pltpu.CompilerParams(
            dimension_semantics=("parallel", "parallel"),
            vmem_limit_bytes=vmem_limit_bytes),
    )(alpha_arr, x3, m3)

    return out3.reshape(B, C, H, W)


def _modulator_ref(x, modulation, *, alpha=-1.0):
    # Pure-JAX reference mirroring the PyTorch code, for correctness checks.
    denorm = jnp.sqrt(jnp.sum(x * x, axis=1, keepdims=True))
    denorm = jnp.maximum(denorm, 1e-12)
    if alpha > 0:
        x = x / (denorm / alpha)
    s = x + modulation
    snorm = jnp.maximum(jnp.sqrt(jnp.sum(s * s, axis=1, keepdims=True)), 1e-12)
    return s / snorm * denorm


if __name__ == "__main__":
    key = jax.random.PRNGKey(0)
    k1, k2 = jax.random.split(key)

    B, C, H, W = 2, 4, 16, 16
    x = jax.random.normal(k1, (B, C, H, W), dtype=jnp.float32)
    mod = jax.random.normal(k2, (B, C, H, W), dtype=jnp.float32)

    # Default module config: Modulator(alpha=-1, alpha_mode='fixed') (alpha<=0).
    out_fixed = jax.block_until_ready(
        modulator_forward(x, mod, alpha=-1.0, alpha_mode="fixed"))
    ref_fixed = _modulator_ref(x, mod, alpha=-1.0)
    assert jnp.allclose(out_fixed, ref_fixed, atol=1e-5, rtol=1e-5)

    # 'learned' config: alpha_factor init 0 -> alpha = exp(0) = 1 (alpha>0 path).
    out_learned = jax.block_until_ready(
        modulator_forward(x, mod, alpha_mode="learned", alpha_factor=0.0))
    ref_learned = _modulator_ref(x, mod, alpha=1.0)
    assert jnp.allclose(out_learned, ref_learned, atol=1e-5, rtol=1e-5)

    # Force the spatial-tiling path (tiny VMEM budget -> T=128, grid=(B, HW/128))
    # to exercise the tiled code path as well.
    out_tiled = jax.block_until_ready(
        modulator_forward(x, mod, alpha=-1.0, vmem_budget_bytes=13_000))
    assert jnp.allclose(out_tiled, ref_fixed, atol=1e-5, rtol=1e-5)

    print("KERNEL_OK")
</pallas_src>

<mosaic_0001>
module attributes {stable_mosaic.version = 11 : i64} {
  func.func @_modulator_kernel(%arg0: i32, %arg1: i32, %arg2: memref<1xf32, #tpu.memory_space<smem>>, %arg3: memref<1x4x256xf32, #tpu.memory_space<vmem>>, %arg4: memref<1x4x256xf32, #tpu.memory_space<vmem>>, %arg5: memref<1x4x256xf32, #tpu.memory_space<vmem>>) attributes {dimension_semantics = [#tpu.dimension_semantics<parallel>, #tpu.dimension_semantics<parallel>], iteration_bounds = array<i64: 2, 1>, scalar_prefetch = 1 : i64, scratch_operands = 0 : i64, tpu.core_type = #tpu.core_type<tc>, window_params = [{transform_indices = @transform_0, window_bounds = array<i64: 1, 4, 256>}, {transform_indices = @transform_1, window_bounds = array<i64: 1, 4, 256>}, {transform_indices = @transform_2, window_bounds = array<i64: 1, 4, 256>}]} {
    %c0 = arith.constant 0 : index
    %c0_0 = arith.constant 0 : index
    %c0_1 = arith.constant 0 : index
    %0 = vector.load %arg3[%c0, %c0_0, %c0_1] : memref<1x4x256xf32, #tpu.memory_space<vmem>>, vector<1x4x256xf32>
    %c0_2 = arith.constant 0 : index
    %c0_3 = arith.constant 0 : index
    %c0_4 = arith.constant 0 : index
    %1 = vector.load %arg4[%c0_2, %c0_3, %c0_4] : memref<1x4x256xf32, #tpu.memory_space<vmem>>, vector<1x4x256xf32>
    %c0_5 = arith.constant 0 : index
    %2 = memref.load %arg2[%c0_5] : memref<1xf32, #tpu.memory_space<smem>>
    %3 = arith.mulf %0, %0 : vector<1x4x256xf32>
    %cst = arith.constant dense<0.000000e+00> : vector<1x256xf32>
    %4 = vector.multi_reduction <add>, %3, %cst [1] : vector<1x4x256xf32> to vector<1x256xf32>
    %5 = vector.shape_cast %4 : vector<1x256xf32> to vector<1x1x256xf32>
    %cst_6 = arith.constant 1.000000e-24 : f32
    %6 = vector.broadcast %cst_6 : f32 to vector<1x1x256xf32>
    %7 = arith.maximumf %5, %6 : vector<1x1x256xf32>
    %8 = math.rsqrt %7 : vector<1x1x256xf32>
    %9 = arith.mulf %7, %8 : vector<1x1x256xf32>
    %cst_7 = arith.constant 0.000000e+00 : f32
    %10 = arith.cmpf ogt, %2, %cst_7 : f32
    %11 = vector.broadcast %2 : f32 to vector<1x1x256xf32>
    %12 = arith.mulf %11, %8 : vector<1x1x256xf32>
    %cst_8 = arith.constant 1.000000e+00 : f32
    %13 = vector.broadcast %cst_8 : f32 to vector<1x1x256xf32>
    %14 = arith.select %10, %12, %13 : vector<1x1x256xf32>
    %15 = vector.broadcast %14 : vector<1x1x256xf32> to vector<1x4x256xf32>
    %16 = arith.mulf %0, %15 : vector<1x4x256xf32>
    %17 = arith.addf %16, %1 : vector<1x4x256xf32>
    %18 = arith.mulf %17, %17 : vector<1x4x256xf32>
    %cst_9 = arith.constant dense<0.000000e+00> : vector<1x256xf32>
    %19 = vector.multi_reduction <add>, %18, %cst_9 [1] : vector<1x4x256xf32> to vector<1x256xf32>
    %20 = vector.shape_cast %19 : vector<1x256xf32> to vector<1x1x256xf32>
    %cst_10 = arith.constant 1.000000e-24 : f32
    %21 = vector.broadcast %cst_10 : f32 to vector<1x1x256xf32>
    %22 = arith.maximumf %20, %21 : vector<1x1x256xf32>
    %23 = math.rsqrt %22 : vector<1x1x256xf32>
    %24 = arith.mulf %9, %23 : vector<1x1x256xf32>
    %25 = vector.broadcast %24 : vector<1x1x256xf32> to vector<1x4x256xf32>
    %26 = arith.mulf %17, %25 : vector<1x4x256xf32>
    %c0_11 = arith.constant 0 : index
    %c0_12 = arith.constant 0 : index
    %c0_13 = arith.constant 0 : index
    %27 = vector.load %arg5[%c0_11, %c0_12, %c0_13] : memref<1x4x256xf32, #tpu.memory_space<vmem>>, vector<1x4x256xf32>
    tpu.vector_store %arg5[%c0_11, %c0_12, %c0_13], %26 {strides = array<i32>} : memref<1x4x256xf32, #tpu.memory_space<vmem>>, vector<1x4x256xf32>,
    return
  }
  func.func @transform_0(%arg0: i32, %arg1: i32, %arg2: memref<1xf32, #tpu.memory_space<smem>>) -> (i32, i32, i32) {
    %c0_i32 = arith.constant 0 : i32
    %c0_i32_0 = arith.constant 0 : i32
    return %arg0, %c0_i32, %arg1 : i32, i32, i32
  }
  func.func @transform_1(%arg0: i32, %arg1: i32, %arg2: memref<1xf32, #tpu.memory_space<smem>>) -> (i32, i32, i32) {
    %c0_i32 = arith.constant 0 : i32
    %c0_i32_0 = arith.constant 0 : i32
    return %arg0, %c0_i32, %arg1 : i32, i32, i32
  }
  func.func @transform_2(%arg0: i32, %arg1: i32, %arg2: memref<1xf32, #tpu.memory_space<smem>>) -> (i32, i32, i32) {
    %c0_i32 = arith.constant 0 : i32
    %c0_i32_0 = arith.constant 0 : i32
    return %arg0, %c0_i32, %arg1 : i32, i32, i32
  }
}

</mosaic_0001>

<llo_original>
// kernel: tpu_custom_call.1
$region0: #{tpu_custom_call.1}
  #allocation0 [shape = 'u32[]', space=smem, size = 0x4, offset = 0x4, fixed_abs, tag = 'smem constant byte address 0x4 - core index']
  #allocation1 [shape = 'u32[144,128]{1,0:T(1,128)}', space=vmem, size = 0x12000, scoped, tag = 'internal scratch']
  #allocation2 [shape = 's32[1]{0}', space=sflag, size = 0x4, scoped, tag = 'scoped memory for tpu_custom_call.1']
  #allocation3 [shape = 'f32[1]{0:T(128)S(6)}', space=smem, size = 0x200, scoped, tag = 'prefetched SMEM operand 0']
  %s0 = inlined_call_operand.<no memory space> [shape: f32[1], index: 0, kind: input, shape index: {}]
  %s1 = inlined_call_operand.hbm [shape: f32[2,4,256], index: 1, kind: input, shape index: {}]
  %s2 = inlined_call_operand.hbm [shape: f32[2,4,256], index: 2, kind: input, shape index: {}]
  %s3 = inlined_call_operand.hbm [shape: f32[2,4,256], index: 3, kind: output, shape index: {}]
  %s4 = sld [smem:[#allocation0]]
  $region49: #{tpu_custom_call.1} parent=0
    _
  %s6 = ssub.s32 1, %s4
  %s7 = scalar_select 0, %s6, %s4
  %8 = sst [smem:[#allocation3]] %s0
  $region1: #{tpu_custom_call.1} parent=0
    #allocation4 [shape = 'u8[8192]{0}', space=vmem, size = 0x2000, scoped, tag = 'input window, operand 1']
    #allocation5 [shape = 's32[2]{0}', space=sflag, size = 0x8, scoped, tag = 'scoped memory for tpu_custom_call.1']
    #allocation6 [shape = 's32[2]{0}', space=sflag, size = 0x8, scoped, tag = 'scoped memory for tpu_custom_call.1']
    #allocation7 [shape = 'u8[8192]{0}', space=vmem, size = 0x2000, scoped, tag = 'input window, operand 2']
    #allocation8 [shape = 's32[2]{0}', space=sflag, size = 0x8, scoped, tag = 'scoped memory for tpu_custom_call.1']
    #allocation9 [shape = 'u8[8192]{0}', space=vmem, size = 0x2000, scoped, tag = 'output window, operand 0']
    %9 = vsyncpa [#allocation5], 0
    %s10 = scalar_lea.sflag [#allocation5], 1
    %11 = vsyncpa %s10, 0
    %12 = vsyncpa [#allocation8], 0
    %s13 = scalar_lea.sflag [#allocation8], 1
    %14 = vsyncpa %s13, 0
    %15 = vsyncpa [#allocation6], 0
    %s16 = scalar_lea.sflag [#allocation6], 1
    %17 = vsyncpa %s16, 0
    loop: start=0, step=1, limit=4
    $region2: #{tpu_custom_call.1} parent=1 // loop_pre_header
      _
    $region3: #{tpu_custom_call.1} parent=1 // loop_header
      %s19 = sphi 0, %s23
      %p20 = scmp.ge.s32.totalorder %s19, 4
      %s26 = sphi 0, %s38
      %s27 = sphi 0, %s34
      %s28 = sphi 0, %s26
      %s29 = sphi 0, %s27
      %s30 = sphi 0, %s28
      %s31 = sphi 0, %s29
      %s43 = sphi 0, %s45
      %s46 = sphi 0, %s43
      %s47 = sphi 0, %s46
      %s63 = sphi 0, %s47
      %s71 = sphi 0, %s73
      %s74 = sphi 0, %s71
      %s75 = sphi 0, %s74
      %s91 = sphi 0, %s75
      %s99 = sphi 0, %s101
      %s102 = sphi 0, %s99
      %s103 = sphi 0, %s102
      %s119 = sphi 0, %s103
    $region4: #{tpu_custom_call.1} parent=1 // loop_header_branch
      %22 = sbr.rel (%p20) target = $region8
    $region5: #{tpu_custom_call.1} parent=1 // loop_body
      %s24 = ssub.s32 %s19, 1
      %s25 = ssub.s32 %s19, 2
      %s32 = sadd.s32 1, %s27
      %p33 = scmp.ge.s32.totalorder %s32, 1
      %s34 = scalar_select %p33, 0, %s32
      %s35 = sadd.s32 1, %s26
      %s36 = scalar_select %p33, %s35, %s26
      %p37 = scmp.ge.s32.totalorder %s36, 2
      %s38 = scalar_select %p37, 0, %s36
      %s39 = ssub.s32 %s26, %s38
      %s40 = ssub.s32 %s27, %s34
      %s41 = sor.u32 %s39, %s40
      %p42 = scmp.eq.s32.totalorder %s41, 0
      %s44 = sadd.s32 %s43, 1
      %s45 = scalar_select %p42, %s43, %s44
      %p48 = pneg %p42
      %p49 = scmp.eq.s32.totalorder %s19, 1
      %p50 = por %p48, %p49
      %p51 = scmp.ne.s32.totalorder %s43, %s46
      %p52 = scmp.eq.s32.totalorder %s19, 0
      %p53 = por %p51, %p52
      %p54 = scmp.ne.s32.totalorder %s43, %s46
      %p55 = scmp.eq.s32.totalorder %s24, 1
      %p56 = por %p54, %p55
      %p57 = scmp.ne.s32.totalorder %s46, %s47
      %p58 = scmp.eq.s32.totalorder %s24, 0
      %p59 = por %p57, %p58
      %p60 = scmp.ne.s32.totalorder %s46, %s47
      %p61 = scmp.eq.s32.totalorder %s25, 1
      %p62 = por %p60, %p61
      %p64 = scmp.ne.s32.totalorder %s47, %s63
      %p65 = scmp.eq.s32.totalorder %s25, 0
      %p66 = por %p64, %p65
      %s67 = ssub.s32 %s26, %s38
      %s68 = ssub.s32 %s27, %s34
      %s69 = sor.u32 %s67, %s68
      %p70 = scmp.eq.s32.totalorder %s69, 0
      %s72 = sadd.s32 %s71, 1
      %s73 = scalar_select %p70, %s71, %s72
      %p76 = pneg %p70
      %p77 = scmp.eq.s32.totalorder %s19, 1
      %p78 = por %p76, %p77
      %p79 = scmp.ne.s32.totalorder %s71, %s74
      %p80 = scmp.eq.s32.totalorder %s19, 0
      %p81 = por %p79, %p80
      %p82 = scmp.ne.s32.totalorder %s71, %s74
      %p83 = scmp.eq.s32.totalorder %s24, 1
      %p84 = por %p82, %p83
      %p85 = scmp.ne.s32.totalorder %s74, %s75
      %p86 = scmp.eq.s32.totalorder %s24, 0
      %p87 = por %p85, %p86
      %p88 = scmp.ne.s32.totalorder %s74, %s75
      %p89 = scmp.eq.s32.totalorder %s25, 1
      %p90 = por %p88, %p89
      %p92 = scmp.ne.s32.totalorder %s75, %s91
      %p93 = scmp.eq.s32.totalorder %s25, 0
      %p94 = por %p92, %p93
      %s95 = ssub.s32 %s26, %s38
      %s96 = ssub.s32 %s27, %s34
      %s97 = sor.u32 %s95, %s96
      %p98 = scmp.eq.s32.totalorder %s97, 0
      %s100 = sadd.s32 %s99, 1
      %s101 = scalar_select %p98, %s99, %s100
      %p104 = pneg %p98
      %p105 = scmp.eq.s32.totalorder %s19, 1
      %p106 = por %p104, %p105
      %p107 = scmp.ne.s32.totalorder %s99, %s102
      %p108 = scmp.eq.s32.totalorder %s19, 0
      %p109 = por %p107, %p108
      %p110 = scmp.ne.s32.totalorder %s99, %s102
      %p111 = scmp.eq.s32.totalorder %s24, 1
      %p112 = por %p110, %p111
      %p113 = scmp.ne.s32.totalorder %s102, %s103
      %p114 = scmp.eq.s32.totalorder %s24, 0
      %p115 = por %p113, %p114
      %p116 = scmp.ne.s32.totalorder %s102, %s103
      %p117 = scmp.eq.s32.totalorder %s25, 1
      %p118 = por %p116, %p117
      %p120 = scmp.ne.s32.totalorder %s103, %s119
      %p121 = scmp.eq.s32.totalorder %s25, 0
      %p122 = por %p120, %p121
      %p123 = scmp.le.s32.totalorder 1, %s19
      %p124 = scmp.lt.s32.totalorder %s19, 3
      %p125 = pnand %p123, %p124
      %p126 = pneg %p125
      // Predicated region
      $region9: #{tpu_custom_call.1} parent=5 // pred_check
        _
      $region10: #{tpu_custom_call.1} parent=5 // pred_check_branch
        %128 = sbr.rel (%p125) target = $region12
      $region11: #{tpu_custom_call.1} parent=5 // pred_region
        %s129 = ssub.s32 %s19, 1
      $region12: #{tpu_custom_call.1} parent=5 // pred_fallthru
        _
      %p130 = scmp.lt.s32.totalorder %s19, 2
      // Predicated region
      $region13: #{tpu_custom_call.1} parent=5 // pred_check
        %p131 = pneg %p130
      $region14: #{tpu_custom_call.1} parent=5 // pred_check_branch
        %133 = sbr.rel (%p131) target = $region16
      $region15: #{tpu_custom_call.1} parent=5 // pred_region
        // Predicated region
        $region17: #{tpu_custom_call.1} parent=15 // pred_check
          %p134 = pneg %p53
        $region18: #{tpu_custom_call.1} parent=15 // pred_check_branch
          %136 = sbr.rel (%p134) target = $region20
        $region19: #{tpu_custom_call.1} parent=15 // pred_region
          %s137 = sand.u32 %s43, 1
          %s138 = scalar_lea.sflag [#allocation5], %s137
          %s139 = sand.u32 %s43, 1
          %s140 = smul.addr %s139, 8
          %s141 = scalar_lea.vmem [#allocation4], %s140
          %s142 = smul.u32 2, %s27
          %s144 = ssub.s32 128, 128
          %145 = vsyncadd %s138, %s144
          %s146 = smul.addr %s26, 2
          %s147 = sadd.s32 %s142, %s146
          %s148 = smul.addr %s147, 64
          %s149 = scalar_lea.hbm %s1, %s148
          %s151 = sshll.u32 %s141, 4
          %s152 = int_to_ptr.vmem [resolvable:$true] %s151
          %154 = dma.hbm_to_vmem [thread:$0]  %s149, 128, %s152, %s138
        $region20: #{tpu_custom_call.1} parent=15 // pred_fallthru
          _
        // Predicated region
        $region21: #{tpu_custom_call.1} parent=15 // pred_check
          %p155 = pneg %p81
        $region22: #{tpu_custom_call.1} parent=15 // pred_check_branch
          %157 = sbr.rel (%p155) target = $region24
        $region23: #{tpu_custom_call.1} parent=15 // pred_region
          %s158 = sand.u32 %s71, 1
          %s159 = scalar_lea.sflag [#allocation8], %s158
          %s160 = sand.u32 %s71, 1
          %s161 = smul.addr %s160, 8
          %s162 = scalar_lea.vmem [#allocation7], %s161
          %s163 = smul.u32 2, %s27
          %s165 = ssub.s32 128, 128
          %166 = vsyncadd %s159, %s165
          %s167 = smul.addr %s26, 2
          %s168 = sadd.s32 %s163, %s167
          %s169 = smul.addr %s168, 64
          %s170 = scalar_lea.hbm %s2, %s169
          %s172 = sshll.u32 %s162, 4
          %s173 = int_to_ptr.vmem [resolvable:$true] %s172
          %175 = dma.hbm_to_vmem [thread:$0]  %s170, 128, %s173, %s159
        $region24: #{tpu_custom_call.1} parent=15 // pred_fallthru
          _
      $region16: #{tpu_custom_call.1} parent=5 // pred_fallthru
        _
      %p176 = scmp.le.s32.totalorder 1, %s19
      %p177 = scmp.lt.s32.totalorder %s19, 3
      %p178 = pnand %p176, %p177
      %p179 = pneg %p178
      // Predicated region
      $region25: #{tpu_custom_call.1} parent=5 // pred_check
        _
      $region26: #{tpu_custom_call.1} parent=5 // pred_check_branch
        %181 = sbr.rel (%p178) target = $region28
      $region27: #{tpu_custom_call.1} parent=5 // pred_region
        %s182 = ssub.s32 %s19, 1
        %s183 = sand.u32 %s46, 1
        %s184 = scalar_lea.sflag [#allocation5], %s183
        %s185 = sand.u32 %s46, 1
        %s186 = smul.addr %s185, 8
        %s187 = scalar_lea.vmem [#allocation4], %s186
        // Predicated region
        $region29: #{tpu_custom_call.1} parent=27 // pred_check
          %p188 = pneg %p59
        $region30: #{tpu_custom_call.1} parent=27 // pred_check_branch
          %190 = sbr.rel (%p188) target = $region32
        $region31: #{tpu_custom_call.1} parent=27 // pred_region
          %191 = dma.done %s184, 128
        $region32: #{tpu_custom_call.1} parent=27 // pred_fallthru
          _
        %s192 = sand.u32 %s74, 1
        %s193 = scalar_lea.sflag [#allocation8], %s192
        %s194 = sand.u32 %s74, 1
        %s195 = smul.addr %s194, 8
        %s196 = scalar_lea.vmem [#allocation7], %s195
        // Predicated region
        $region33: #{tpu_custom_call.1} parent=27 // pred_check
          %p197 = pneg %p87
        $region34: #{tpu_custom_call.1} parent=27 // pred_check_branch
          %199 = sbr.rel (%p197) target = $region36
        $region35: #{tpu_custom_call.1} parent=27 // pred_region
          %200 = dma.done %s193, 128
        $region36: #{tpu_custom_call.1} parent=27 // pred_fallthru
          _
        %s201 = sand.u32 %s46, 1
        %s202 = scalar_lea.sflag [#allocation5], %s201
        %s203 = sand.u32 %s46, 1
        %s204 = smul.addr %s203, 8
        %s205 = scalar_lea.vmem [#allocation4], %s204
        %p206 = pneg %p59
        %p207 = pneg %p56
        %s208 = sand.u32 %s74, 1
        %s209 = scalar_lea.sflag [#allocation8], %s208
        %s210 = sand.u32 %s74, 1
        %s211 = smul.addr %s210, 8
        %s212 = scalar_lea.vmem [#allocation7], %s211
        %p213 = pneg %p87
        %p214 = pneg %p84
        %p215 = pneg %p115
        %p216 = pneg %p112
        %s217 = sand.u32 %s102, 1
        %s218 = scalar_lea.sflag [#allocation6], %s217
        %s219 = sand.u32 %s102, 1
        %s220 = smul.addr %s219, 8
        %s221 = scalar_lea.vmem [#allocation9], %s220
        %s222 = smul.u32 2, %s29
        %s223 = smul.u32 2, %s29
        %s224 = smul.u32 2, %s29
        %v225 = vld [vmem:[%s187] sm:$0xff]
        %v226 = vld [vmem:[%s196] sm:$0xff]
        %s227 = sld [smem:[#allocation3]]
        %v228 = vmul.f32 %v225, %v225
        %v230 = vcombine.high %v228, %v228
        %vm232 = vcmask 1043456
        %v233 = vsel %vm232, %v228, 0.0
        %v234 = vrot.slane %v233, 4
        %v235 = vadd.f32 %v233, %v234
        %v236 = vrot.slane %v235, 2
        %v237 = vadd.f32 %v235, %v236
        %v238 = vrot.slane %v237, 1
        %v239 = vadd.f32 %v237, %v238
        %v240 = vsel %vm232, %v230, 0.0
        %v241 = vrot.slane %v240, 4
        %v242 = vadd.f32 %v240, %v241
        %v243 = vrot.slane %v242, 2
        %v244 = vadd.f32 %v242, %v243
        %v245 = vrot.slane %v244, 1
        %v246 = vadd.f32 %v244, %v245
        %v247 = vmax.f32 %v239, 1e-24
        %v248 = vmax.f32 %v246, 1e-24
        %v249 = vrsqrt.pop %v247
        %v250 = vrsqrt.pop %v248
        %v251 = vmul.f32 %v247, %v249
        %v252 = vmul.f32 %v248, %v250
        %p253 = scmp.gt.f32.partialorder %s227, 0.0
        %v254 = vstv %s227
        %v255 = vmul.f32 %v254, %v249
        %v256 = vmul.f32 %v254, %v250
        %s257 = scalar_select %p253, 1, 0
        %v258 = vstv %s257
        %vm259 = vcmp.eq.s32.totalorder %v258, 1
        %v260 = vsel %vm259, %v255, 1.0
        %v261 = vsel %vm259, %v256, 1.0
        %v264 = vcombine.low %v260, %v261
        %v266 = vmul.f32 %v225, %v264
        %v267 = vadd.f32 %v266, %v226
        %v268 = vmul.f32 %v267, %v267
        %v270 = vcombine.high %v268, %v268
        %v272 = vsel %vm232, %v268, 0.0
        %v273 = vrot.slane %v272, 4
        %v274 = vadd.f32 %v272, %v273
        %v275 = vrot.slane %v274, 2
        %v276 = vadd.f32 %v274, %v275
        %v277 = vrot.slane %v276, 1
        %v278 = vadd.f32 %v276, %v277
        %v279 = vsel %vm232, %v270, 0.0
        %v280 = vrot.slane %v279, 4
        %v281 = vadd.f32 %v279, %v280
        %v282 = vrot.slane %v281, 2
        %v283 = vadd.f32 %v281, %v282
        %v284 = vrot.slane %v283, 1
        %v285 = vadd.f32 %v283, %v284
        %v286 = vmax.f32 %v278, 1e-24
        %v287 = vmax.f32 %v285, 1e-24
        %v288 = vrsqrt.pop %v286
        %v289 = vrsqrt.pop %v287
        %v290 = vmul.f32 %v251, %v288
        %v291 = vmul.f32 %v252, %v289
        %v294 = vcombine.low %v290, %v291
        %v296 = vmul.f32 %v267, %v294
        %297 = vst [vmem:[%s221] sm:$0xff] %v296
        %s298 = sand.u32 %s102, 1
        %s299 = scalar_lea.sflag [#allocation6], %s298
        %s300 = sand.u32 %s102, 1
        %s301 = smul.addr %s300, 8
        %s302 = scalar_lea.vmem [#allocation9], %s301
        // Predicated region
        $region37: #{tpu_custom_call.1} parent=27 // pred_check
          %p303 = pneg %p112
        $region38: #{tpu_custom_call.1} parent=27 // pred_check_branch
          %305 = sbr.rel (%p303) target = $region40
        $region39: #{tpu_custom_call.1} parent=27 // pred_region
          %s306 = smul.u32 2, %s29
          %s308 = ssub.s32 128, 128
          %309 = vsyncadd %s299, %s308
          %s310 = smul.addr %s28, 2
          %s311 = sadd.s32 %s306, %s310
          %s312 = smul.addr %s311, 64
          %s313 = scalar_lea.hbm %s3, %s312
          %s315 = sshll.u32 %s302, 4
          %s316 = int_to_ptr.vmem [resolvable:$true] %s315
          %318 = dma.vmem_to_hbm [thread:$0]  %s316, 128, %s313, %s299
        $region40: #{tpu_custom_call.1} parent=27 // pred_fallthru
          _
      $region28: #{tpu_custom_call.1} parent=5 // pred_fallthru
        _
      %p319 = scmp.le.s32.totalorder 2, %s19
      // Predicated region
      $region41: #{tpu_custom_call.1} parent=5 // pred_check
        %p320 = pneg %p319
      $region42: #{tpu_custom_call.1} parent=5 // pred_check_branch
        %322 = sbr.rel (%p320) target = $region44
      $region43: #{tpu_custom_call.1} parent=5 // pred_region
        %s323 = ssub.s32 %s19, 2
        // Predicated region
        $region45: #{tpu_custom_call.1} parent=43 // pred_check
          %p324 = pneg %p118
        $region46: #{tpu_custom_call.1} parent=43 // pred_check_branch
          %326 = sbr.rel (%p324) target = $region48
        $region47: #{tpu_custom_call.1} parent=43 // pred_region
          %s327 = sand.u32 %s103, 1
          %s328 = scalar_lea.sflag [#allocation6], %s327
          %s329 = sand.u32 %s103, 1
          %s330 = smul.addr %s329, 8
          %s331 = scalar_lea.vmem [#allocation9], %s330
          %332 = dma.done %s328, 128
        $region48: #{tpu_custom_call.1} parent=43 // pred_fallthru
          _
      $region44: #{tpu_custom_call.1} parent=5 // pred_fallthru
        _
    $region6: #{tpu_custom_call.1} parent=1 // loop_footer
      %s23 = sadd.s32 1, %s19
    $region7: #{tpu_custom_call.1} parent=1 // loop_footer_branch
      %18 = sbr.rel target = $region3
    $region8: #{tpu_custom_call.1} parent=1 // loop_exit
      _
    %333 = vsyncpa [#allocation5], 1
    %s334 = scalar_lea.sflag [#allocation5], 1
    %335 = vsyncpa %s334, 1
    %336 = vsyncpa [#allocation8], 1
    %s337 = scalar_lea.sflag [#allocation8], 1
    %338 = vsyncpa %s337, 1
    %339 = vsyncpa [#allocation6], 1
    %s340 = scalar_lea.sflag [#allocation6], 1
    %341 = vsyncpa %s340, 1

</llo_original>
